<compile_context>
chip_gen: v6e
topology: v6e:2x2x1
jax: 0.10.0
libtpu: 0.0.40
codegen_flags: <defaults>
</compile_context>

<pallas_src>
import jax
import jax.numpy as jnp
from jax import lax
from jax.experimental import pallas as pl
from jax.experimental.pallas import tpu as pltpu

HIDDEN = 64          # logical hidden width (matches the PyTorch module)
HIDDEN_PAD = 128     # padded to full lane width


def _round_up(x, m):
    return (x + m - 1) // m * m


def _critic_kernel(x_ref, w_ref, b_ref, o_ref):
    """x_ref: (TB, OP) bf16 state tile; w_ref: bf16 weight slab;
    b_ref: (8, 128) f32 bias/head slab; o_ref: (1, TB) output row."""
    op = x_ref.shape[1]

    x = x_ref[...]                                 # (TB, OP) bf16
    w1 = w_ref[0:op, :]                            # (OP, 128) bf16, 16-row aligned
    w2 = w_ref[op:op + HIDDEN_PAD, :]              # (128, 128) bf16
    b1 = b_ref[0:1, :]                             # (1, 128) f32
    b2 = b_ref[1:2, :]                             # (1, 128) f32, col 64 == 1.0
    w3 = b_ref[2:3, :]                             # (1, 128) f32, col 64 == b3

    # bf16 MXU matmuls with f32 accumulation; elementwise work stays f32
    # (v5e has no bf16 VALU), re-cast only for the second MXU pass.
    h1 = jnp.maximum(
        jnp.dot(x, w1, preferred_element_type=jnp.float32) + b1, 0.0)
    h2 = jnp.maximum(
        jnp.dot(h1.astype(jnp.bfloat16), w2,
                preferred_element_type=jnp.float32) + b2, 0.0)

    # Final 64->1 layer with b3 folded in (constant-one hidden feature):
    # (1,128) x (TB,128) contraction -> lane-dense (1, TB) output row.
    out = lax.dot_general(w3, h2, (((1,), (1,)), ((), ())),
                          preferred_element_type=jnp.float32)
    o_ref[...] = out.astype(o_ref.dtype)


def pack_params(params):
    """Pack parameters into a bf16 weight slab + a tiny f32 bias/head slab.

    Weight slab (bf16), 16-row-aligned offsets:
      rows [0 : OP)          w1 (obs rows zero-padded to OP, cols 64->128 padded)
      rows [OP : OP+128)     w2 (64->128 rows/cols zero-padded)
    Bias slab (f32, (8, 128)):
      row 0  b1   (zero-padded to 128 lanes)
      row 1  b2   with element 64 set to 1.0   (constant-one feature)
      row 2  w3^T with element 64 set to b3    (folds final bias)
      rows 3..7 zeros (sublane-tile padding)
    """
    w1, b1 = params["w1"], params["b1"]
    w2, b2 = params["w2"], params["b2"]
    w3, b3 = params["w3"], params["b3"]
    obs, hid = w1.shape
    op = _round_up(obs, 16)   # 16-row alignment for bf16 sublane packing

    w1p = jnp.zeros((op, HIDDEN_PAD), jnp.float32).at[:obs, :hid].set(w1)
    w2p = jnp.zeros((HIDDEN_PAD, HIDDEN_PAD), jnp.float32).at[:hid, :hid].set(w2)
    wslab = jnp.concatenate([w1p, w2p], axis=0).astype(jnp.bfloat16)

    bslab = jnp.zeros((8, HIDDEN_PAD), jnp.float32)
    bslab = bslab.at[0, :hid].set(b1.reshape(-1))
    bslab = bslab.at[1, :hid].set(b2.reshape(-1)).at[1, hid].set(1.0)
    bslab = bslab.at[2, :hid].set(w3.reshape(-1)).at[2, hid].set(
        b3.reshape(()).astype(jnp.float32))
    return wslab, bslab, op


def critic_forward(state, params, *, batch_tile=2048):
    """state: (B, obs); params: dict of w1,b1,w2,b2,w3,b3 (torch Linear shapes).

    Returns (B, 1) values in state.dtype (accumulation is f32; matmul inputs
    are bf16, so expect ~1e-3..1e-2 relative error vs. an f32 reference).
    """
    b, obs = state.shape
    wslab, bslab, op = pack_params(params)

    # bf16 state: halves the kernel-side state DMA and feeds the bf16 MXU.
    x = state.astype(jnp.bfloat16)
    if op != obs:
        # small obs -> OP column pad only (no batch-dim pad / HBM copy of rows)
        x = jnp.pad(x, ((0, 0), (0, op - obs)))

    # Batch tile: multiple of 16 (bf16 sublane packing); large to amortize
    # ~0.35 us/step grid overhead, capped so big batches keep >= 2 grid steps
    # (both TensorCores on v7x). Ragged last tile handled by Pallas boundary
    # padding -- padded rows never mix with valid rows and are sliced off.
    bt = max(16, _round_up(batch_tile, 16))
    tb = min(_round_up(b, 16), bt)
    if b >= 32:
        tb = min(tb, _round_up(pl.cdiv(b, 2), 16))
    grid = pl.cdiv(b, tb)

    out = pl.pallas_call(
        _critic_kernel,
        out_shape=jax.ShapeDtypeStruct((grid, tb), state.dtype),
        grid=(grid,),
        in_specs=[
            # state tile: double-buffered across the batch grid
            pl.BlockSpec((tb, op), lambda i: (i, 0)),
            # packed bf16 weights: same block every step -> VMEM-resident
            pl.BlockSpec(wslab.shape, lambda i: (0, 0)),
            # f32 biases / final row: VMEM-resident
            pl.BlockSpec(bslab.shape, lambda i: (0, 0)),
        ],
        # lane-dense output: one full-width (1, tb) row per grid step
        out_specs=pl.BlockSpec((1, tb), lambda i: (i, 0)),
        compiler_params=pltpu.CompilerParams(
            dimension_semantics=("parallel",),  # megacore split on v7x
        ),
    )(x, wslab, bslab)

    return out.reshape(grid * tb, 1)[:b]


def init_params(key, observation_size, hidden=HIDDEN):
    """Deterministic parameter init (uniform, PyTorch-Linear-like scale)."""
    ks = jax.random.split(key, 6)

    def lin(kw, kb, fan_in, fan_out):
        bound = 1.0 / jnp.sqrt(fan_in)
        w = jax.random.uniform(kw, (fan_in, fan_out), jnp.float32, -bound, bound)
        b_ = jax.random.uniform(kb, (fan_out,), jnp.float32, -bound, bound)
        return w, b_

    w1, b1 = lin(ks[0], ks[1], observation_size, hidden)
    w2, b2 = lin(ks[2], ks[3], hidden, hidden)
    w3, b3 = lin(ks[4], ks[5], hidden, 1)
    return {"w1": w1, "b1": b1, "w2": w2, "b2": b2, "w3": w3, "b3": b3}


def critic_reference(state, p):
    h1 = jnp.maximum(state @ p["w1"] + p["b1"], 0.0)
    h2 = jnp.maximum(h1 @ p["w2"] + p["b2"], 0.0)
    return h2 @ p["w3"] + p["b3"]


if __name__ == "__main__":
    key = jax.random.PRNGKey(0)
    k_param, k_state = jax.random.split(key)

    observation_size = 32
    batch = 8

    params = init_params(k_param, observation_size)
    state = jax.random.normal(k_state, (batch, observation_size), jnp.float32)

    out = critic_forward(state, params)
    out = jax.block_until_ready(out)

    ref = critic_reference(state, params)
    assert out.shape == (batch, 1), out.shape
    # bf16 matmul inputs (f32 accumulation) -> loosen tolerance vs f32 reference
    assert jnp.allclose(out, ref, atol=5e-2, rtol=5e-2), (out, ref)

    print("KERNEL_OK")
</pallas_src>

<mosaic_0001>
module attributes {stable_mosaic.version = 11 : i64} {
  func.func @_critic_kernel(%arg0: i32, %arg1: memref<16x32xbf16, #tpu.memory_space<vmem>>, %arg2: memref<160x128xbf16, #tpu.memory_space<vmem>>, %arg3: memref<8x128xf32, #tpu.memory_space<vmem>>, %arg4: memref<1x16xf32, #tpu.memory_space<vmem>>) attributes {dimension_semantics = [#tpu.dimension_semantics<parallel>], iteration_bounds = array<i64: 1>, scalar_prefetch = 0 : i64, scratch_operands = 0 : i64, tpu.core_type = #tpu.core_type<tc>, window_params = [{transform_indices = @transform_0, window_bounds = array<i64: 16, 32>}, {pipeline_mode = #tpu.pipeline_mode<synchronous>, transform_indices = @transform_1, window_bounds = array<i64: 160, 128>}, {pipeline_mode = #tpu.pipeline_mode<synchronous>, transform_indices = @transform_2, window_bounds = array<i64: 8, 128>}, {transform_indices = @transform_3, window_bounds = array<i64: 1, 16>}]} {
    %c0 = arith.constant 0 : index
    %c0_0 = arith.constant 0 : index
    %0 = vector.load %arg1[%c0, %c0_0] : memref<16x32xbf16, #tpu.memory_space<vmem>>, vector<16x32xbf16>
    %c0_1 = arith.constant 0 : index
    %c0_2 = arith.constant 0 : index
    %1 = vector.load %arg2[%c0_1, %c0_2] : memref<160x128xbf16, #tpu.memory_space<vmem>>, vector<32x128xbf16>
    %c32 = arith.constant 32 : index
    %c0_3 = arith.constant 0 : index
    %2 = vector.load %arg2[%c32, %c0_3] : memref<160x128xbf16, #tpu.memory_space<vmem>>, vector<128x128xbf16>
    %c0_4 = arith.constant 0 : index
    %c0_5 = arith.constant 0 : index
    %3 = vector.load %arg3[%c0_4, %c0_5] : memref<8x128xf32, #tpu.memory_space<vmem>>, vector<1x128xf32>
    %c1 = arith.constant 1 : index
    %c0_6 = arith.constant 0 : index
    %4 = vector.load %arg3[%c1, %c0_6] : memref<8x128xf32, #tpu.memory_space<vmem>>, vector<1x128xf32>
    %c2 = arith.constant 2 : index
    %c0_7 = arith.constant 0 : index
    %5 = vector.load %arg3[%c2, %c0_7] : memref<8x128xf32, #tpu.memory_space<vmem>>, vector<1x128xf32>
    %cst = arith.constant dense<0.000000e+00> : vector<16x128xf32>
    %6 = tpu.matmul %0, %1, %cst {dimension_numbers = #tpu.dot_dimension_numbers<[1], [0], [0], [1], [0, 0, 1, 1], [], []>} : vector<16x32xbf16>, vector<32x128xbf16>, vector<16x128xf32> -> vector<16x128xf32>
    %7 = vector.broadcast %3 : vector<1x128xf32> to vector<16x128xf32>
    %8 = arith.addf %6, %7 : vector<16x128xf32>
    %cst_8 = arith.constant 0.000000e+00 : f32
    %9 = vector.broadcast %cst_8 : f32 to vector<16x128xf32>
    %10 = arith.maximumf %8, %9 : vector<16x128xf32>
    %11 = arith.truncf %10 : vector<16x128xf32> to vector<16x128xbf16>
    %cst_9 = arith.constant dense<0.000000e+00> : vector<16x128xf32>
    %12 = tpu.matmul %11, %2, %cst_9 {dimension_numbers = #tpu.dot_dimension_numbers<[1], [0], [0], [1], [0, 0, 1, 1], [], []>} : vector<16x128xbf16>, vector<128x128xbf16>, vector<16x128xf32> -> vector<16x128xf32>
    %13 = vector.broadcast %4 : vector<1x128xf32> to vector<16x128xf32>
    %14 = arith.addf %12, %13 : vector<16x128xf32>
    %cst_10 = arith.constant 0.000000e+00 : f32
    %15 = vector.broadcast %cst_10 : f32 to vector<16x128xf32>
    %16 = arith.maximumf %14, %15 : vector<16x128xf32>
    %cst_11 = arith.constant dense<0.000000e+00> : vector<1x16xf32>
    %17 = tpu.matmul %5, %16, %cst_11 {dimension_numbers = #tpu.dot_dimension_numbers<[1], [1], [0], [0], [0, 0, 1, 0], [], []>} : vector<1x128xf32>, vector<16x128xf32>, vector<1x16xf32> -> vector<1x16xf32>
    %c0_12 = arith.constant 0 : index
    %c0_13 = arith.constant 0 : index
    %18 = vector.load %arg4[%c0_12, %c0_13] : memref<1x16xf32, #tpu.memory_space<vmem>>, vector<1x16xf32>
    tpu.vector_store %arg4[%c0_12, %c0_13], %17 {strides = array<i32>} : memref<1x16xf32, #tpu.memory_space<vmem>>, vector<1x16xf32>,
    return
  }
  func.func @transform_0(%arg0: i32) -> (i32, i32) {
    %c0_i32 = arith.constant 0 : i32
    %c0_i32_0 = arith.constant 0 : i32
    return %arg0, %c0_i32 : i32, i32
  }
  func.func @transform_1(%arg0: i32) -> (i32, i32) {
    %c0_i32 = arith.constant 0 : i32
    %c0_i32_0 = arith.constant 0 : i32
    %c0_i32_1 = arith.constant 0 : i32
    return %c0_i32, %c0_i32_0 : i32, i32
  }
  func.func @transform_2(%arg0: i32) -> (i32, i32) {
    %c0_i32 = arith.constant 0 : i32
    %c0_i32_0 = arith.constant 0 : i32
    %c0_i32_1 = arith.constant 0 : i32
    return %c0_i32, %c0_i32_0 : i32, i32
  }
  func.func @transform_3(%arg0: i32) -> (i32, i32) {
    %c0_i32 = arith.constant 0 : i32
    %c0_i32_0 = arith.constant 0 : i32
    return %arg0, %c0_i32 : i32, i32
  }
}

</mosaic_0001>

<llo_original>
// kernel: tpu_custom_call.1
$region0: #{tpu_custom_call.1}
  #allocation0 [shape = 'u32[]', space=smem, size = 0x4, offset = 0x4, fixed_abs, tag = 'smem constant byte address 0x4 - core index']
  #allocation1 [shape = 'u32[144,128]{1,0:T(1,128)}', space=vmem, size = 0x12000, scoped, tag = 'internal scratch']
  %s0 = inlined_call_operand.hbm [shape: bf16[8,32], index: 0, kind: input, shape index: {}]
  %s1 = inlined_call_operand.hbm [shape: bf16[160,128], index: 1, kind: input, shape index: {}]
  %s2 = inlined_call_operand.hbm [shape: f32[8,128], index: 2, kind: input, shape index: {}]
  %s3 = inlined_call_operand.hbm [shape: f32[1,16], index: 3, kind: output, shape index: {}]
  %s4 = sld [smem:[#allocation0]]
  $region34: #{tpu_custom_call.1} parent=0
    _
  %s6 = ssub.s32 1, %s4
  %s7 = scalar_select 0, %s6, %s4
  $region1: #{tpu_custom_call.1} parent=0
    #allocation2 [shape = 'u8[4096]{0}', space=vmem, size = 0x1000, scoped, tag = 'input window, operand 0, single buffered']
    #allocation3 [shape = 's32[1]{0}', space=sflag, size = 0x4, scoped, tag = 'scoped memory for tpu_custom_call.1']
    #allocation4 [shape = 's32[1]{0}', space=sflag, size = 0x4, scoped, tag = 'scoped memory for tpu_custom_call.1']
    #allocation5 [shape = 'u8[40960]{0}', space=vmem, size = 0xa000, scoped, tag = 'input window, operand 1, single buffered']
    #allocation6 [shape = 's32[1]{0}', space=sflag, size = 0x4, scoped, tag = 'scoped memory for tpu_custom_call.1']
    #allocation7 [shape = 'u8[4096]{0}', space=vmem, size = 0x1000, scoped, tag = 'input window, operand 2, single buffered']
    #allocation8 [shape = 'u8[512]{0}', space=vmem, size = 0x400, scoped, tag = 'output window, operand 0, single buffered']
    %8 = vsyncpa [#allocation3], 0
    %9 = vsyncpa [#allocation6], 0
    %10 = vsyncpa [#allocation4], 0
    // Predicated region
    $region2: #{tpu_custom_call.1} parent=1 // pred_check
      _
    $region3: #{tpu_custom_call.1} parent=1 // pred_check_branch
      %12 = sbr.rel (0) target = $region5
    $region4: #{tpu_custom_call.1} parent=1 // pred_region
      %s14 = ssub.s32 128, 64
      %15 = vsyncadd [#allocation3], %s14
      %s16 = sshll.u32 [#allocation2], 4
      %s17 = int_to_ptr.vmem [resolvable:$true] %s16
      %22 = dma.hbm_to_vmem [thread:$0]  %s0, 64, %s17, [#allocation3], 64, 64, 4
    $region5: #{tpu_custom_call.1} parent=1 // pred_fallthru
      _
    // Predicated region
    $region6: #{tpu_custom_call.1} parent=1 // pred_check
      _
    $region7: #{tpu_custom_call.1} parent=1 // pred_check_branch
      %24 = sbr.rel (0) target = $region9
    $region8: #{tpu_custom_call.1} parent=1 // pred_region
      %s26 = ssub.s32 1280, 1280
      %27 = vsyncadd [#allocation6], %s26
      %s28 = sshll.u32 [#allocation5], 4
      %s29 = int_to_ptr.vmem [resolvable:$true] %s28
      %34 = dma.hbm_to_vmem [thread:$0]  %s1, 1280, %s29, [#allocation6], 64, 64, 4
    $region9: #{tpu_custom_call.1} parent=1 // pred_fallthru
      _
    // Predicated region
    $region10: #{tpu_custom_call.1} parent=1 // pred_check
      _
    $region11: #{tpu_custom_call.1} parent=1 // pred_check_branch
      %36 = sbr.rel (0) target = $region13
    $region12: #{tpu_custom_call.1} parent=1 // pred_region
      %s38 = ssub.s32 128, 128
      %39 = vsyncadd [#allocation6], %s38
      %s41 = sshll.u32 [#allocation7], 4
      %s42 = int_to_ptr.vmem [resolvable:$true] %s41
      %44 = dma.hbm_to_vmem [thread:$0]  %s2, 128, %s42, [#allocation6]
    $region13: #{tpu_custom_call.1} parent=1 // pred_fallthru
      _
    // Predicated region
    $region14: #{tpu_custom_call.1} parent=1 // pred_check
      _
    $region15: #{tpu_custom_call.1} parent=1 // pred_check_branch
      %46 = sbr.rel (0) target = $region17
    $region16: #{tpu_custom_call.1} parent=1 // pred_region
      %47 = dma.done [#allocation3], 128
    $region17: #{tpu_custom_call.1} parent=1 // pred_fallthru
      _
    // Predicated region
    $region18: #{tpu_custom_call.1} parent=1 // pred_check
      _
    $region19: #{tpu_custom_call.1} parent=1 // pred_check_branch
      %49 = sbr.rel (0) target = $region21
    $region20: #{tpu_custom_call.1} parent=1 // pred_region
      %50 = dma.done [#allocation6], 1280
    $region21: #{tpu_custom_call.1} parent=1 // pred_fallthru
      _
    // Predicated region
    $region22: #{tpu_custom_call.1} parent=1 // pred_check
      _
    $region23: #{tpu_custom_call.1} parent=1 // pred_check_branch
      %52 = sbr.rel (0) target = $region25
    $region24: #{tpu_custom_call.1} parent=1 // pred_region
      %53 = dma.done [#allocation6], 128
    $region25: #{tpu_custom_call.1} parent=1 // pred_fallthru
      _
    %v55 = vld [vmem:[#allocation2] sm:$0xf]
    %v56 = vld [vmem:[#allocation2 + $0x4] sm:$0xf]
    %v57 = vld [vmem:[#allocation5] sm:$0xf]
    %v58 = vld [vmem:[#allocation5 + $0x4] sm:$0xf]
    %v59 = vld [vmem:[#allocation5 + $0x8] sm:$0xf]
    %v60 = vld [vmem:[#allocation5 + $0xc] sm:$0xf]
    %v61 = vld [vmem:[#allocation5 + $0x10] sm:$0xf]
    %v62 = vld [vmem:[#allocation5 + $0x14] sm:$0xf]
    %v63 = vld [vmem:[#allocation5 + $0x18] sm:$0xf]
    %v64 = vld [vmem:[#allocation5 + $0x1c] sm:$0xf]
    %v65 = vld [vmem:[#allocation5 + $0x20] sm:$0xf]
    %v66 = vld [vmem:[#allocation5 + $0x24] sm:$0xf]
    %v67 = vld [vmem:[#allocation5 + $0x28] sm:$0xf]
    %v68 = vld [vmem:[#allocation5 + $0x2c] sm:$0xf]
    %v69 = vld [vmem:[#allocation5 + $0x30] sm:$0xf]
    %v70 = vld [vmem:[#allocation5 + $0x34] sm:$0xf]
    %v71 = vld [vmem:[#allocation5 + $0x38] sm:$0xf]
    %v72 = vld [vmem:[#allocation5 + $0x3c] sm:$0xf]
    %v73 = vld [vmem:[#allocation5 + $0x40] sm:$0xf]
    %v74 = vld [vmem:[#allocation5 + $0x44] sm:$0xf]
    %v75 = vld [vmem:[#allocation5 + $0x48] sm:$0xf]
    %v76 = vld [vmem:[#allocation5 + $0x4c] sm:$0xf]
    %v77 = vld [vmem:[#allocation7] sm:$0x1]
    %v78 = vld [vmem:[#allocation7 + $0x1] sm:$0x1]
    %v79 = vld [vmem:[#allocation7 + $0x2] sm:$0x1]
    %v80 = vlaneseq
    %v81 = vshrl.u32 %v80, 7
    %v82 = vsub.s32 0, %v81
    %v83 = vrot.slane %v77, %v82
    %v86 = vunpack.c.l.b16 %v55
    %v87 = vunpack.c.l.b16 %v56
    %v88 = vpack.c.b16 %v87, %v86
    %v93 = vunpack.c.l.b16 %v57
    %v94 = vunpack.c.l.b16 %v58
    %v95 = vunpack.c.l.b16 %v59
    %v96 = vunpack.c.l.b16 %v60
    %v97 = vpack.c.b16 %v94, %v93
    %v98 = vpack.c.b16 %v96, %v95
    %vm101 = vcmask 261120
    %v103 = vsel %vm101, %v88, 0
    %105 = vmatprep.subr.bf16.mxu0 0
    %106 = vmatpush1.bf16.msra.mxu0 0
    %107 = vmatprep.subr.bf16.mxu0 0
    %108 = vmatpush1.bf16.msra.mxu0 0
    %109 = vmatprep.subr.bf16.mxu0 0
    %110 = vmatpush1.bf16.msra.mxu0 0
    %111 = vmatprep.subr.bf16.mxu0 0
    %112 = vmatpush1.bf16.msra.mxu0 0
    %113 = vmatprep.subr.bf16.mxu0 0
    %114 = vmatpush1.bf16.msra.mxu0 0
    %115 = vmatprep.subr.bf16.mxu0 0
    %116 = vmatpush1.bf16.msra.mxu0 0
    %117 = vmatprep.subr.bf16.mxu0 0
    %118 = vmatpush1.bf16.msra.mxu0 %v98
    %119 = vmatprep.subr.bf16.mxu0 0
    %120 = vmatpush1.bf16.msra.mxu0 %v97
    %121 = vmatprep.subr.bf16.mxu0 0
    %122 = vmatpush2.bf16.msra.mxu0 0
    %123 = vmatprep.subr.bf16.mxu0 0
    %124 = vmatpush2.bf16.msra.mxu0 0
    %125 = vmatprep.subr.bf16.mxu0 0
    %126 = vmatpush2.bf16.msra.mxu0 0
    %127 = vmatprep.subr.bf16.mxu0 0
    %128 = vmatpush2.bf16.msra.mxu0 0
    %129 = vmatprep.subr.bf16.mxu0 0
    %130 = vmatpush2.bf16.msra.mxu0 0
    %131 = vmatprep.subr.bf16.mxu0 0
    %132 = vmatpush2.bf16.msra.mxu0 0
    %133 = vmatprep.subr.bf16.mxu0 0
    %134 = vmatpush2.bf16.msra.mxu0 0
    %135 = vmatprep.subr.bf16.mxu0 0
    %136 = vmatpush2.bf16.msra.mxu0 0
    %137 = vmatprep.mubr.bf16.mxu0 0
    %138 = vmatmul.mubr.bf16.gmra.mxu0 %v103
    %v139 = vpop.f32.mrf.mxu0
    %v140 = vadd.f32 %v83, %v139
    %v141 = vpop.f32.mrf.mxu0
    %v142 = vpop.f32.mrf.mxu0
    %v143 = vadd.f32 %v83, %v142
    %v144 = vpop.f32.mrf.mxu0
    %145 = vdwg.mxu0
    %v146 = vmax.f32 %v140, 0.0
    %v147 = vmax.f32 %v143, 0.0
    %v148 = vpack.c.bf16 %v147, %v146
    %v149 = vlaneseq
    %v150 = vshrl.u32 %v149, 7
    %v151 = vsub.s32 0, %v150
    %v152 = vrot.slane %v78, %v151
    %v169 = vunpack.c.l.b16 %v61
    %v170 = vunpack.c.l.b16 %v62
    %v171 = vunpack.c.l.b16 %v63
    %v172 = vunpack.c.l.b16 %v64
    %v173 = vunpack.c.l.b16 %v65
    %v174 = vunpack.c.l.b16 %v66
    %v175 = vunpack.c.l.b16 %v67
    %v176 = vunpack.c.l.b16 %v68
    %v177 = vunpack.c.l.b16 %v69
    %v178 = vunpack.c.l.b16 %v70
    %v179 = vunpack.c.l.b16 %v71
    %v180 = vunpack.c.l.b16 %v72
    %v181 = vunpack.c.l.b16 %v73
    %v182 = vunpack.c.l.b16 %v74
    %v183 = vunpack.c.l.b16 %v75
    %v184 = vunpack.c.l.b16 %v76
    %v185 = vpack.c.b16 %v170, %v169
    %v186 = vpack.c.b16 %v172, %v171
    %v187 = vpack.c.b16 %v174, %v173
    %v188 = vpack.c.b16 %v176, %v175
    %v189 = vpack.c.b16 %v178, %v177
    %v190 = vpack.c.b16 %v180, %v179
    %v191 = vpack.c.b16 %v182, %v181
    %v192 = vpack.c.b16 %v184, %v183
    %201 = vmatprep.subr.bf16.mxu0 0
    %202 = vmatpush1.bf16.msra.mxu0 %v192
    %203 = vmatprep.subr.bf16.mxu0 0
    %204 = vmatpush1.bf16.msra.mxu0 %v191
    %205 = vmatprep.subr.bf16.mxu0 0
    %206 = vmatpush1.bf16.msra.mxu0 %v190
    %207 = vmatprep.subr.bf16.mxu0 0
    %208 = vmatpush1.bf16.msra.mxu0 %v189
    %209 = vmatprep.subr.bf16.mxu0 0
    %210 = vmatpush1.bf16.msra.mxu0 %v188
    %211 = vmatprep.subr.bf16.mxu0 0
    %212 = vmatpush1.bf16.msra.mxu0 %v187
    %213 = vmatprep.subr.bf16.mxu0 0
    %214 = vmatpush1.bf16.msra.mxu0 %v186
    %215 = vmatprep.subr.bf16.mxu0 0
    %216 = vmatpush1.bf16.msra.mxu0 %v185
    %217 = vmatprep.subr.bf16.mxu0 0
    %218 = vmatpush2.bf16.msra.mxu0 0
    %219 = vmatprep.subr.bf16.mxu0 0
    %220 = vmatpush2.bf16.msra.mxu0 0
    %221 = vmatprep.subr.bf16.mxu0 0
    %222 = vmatpush2.bf16.msra.mxu0 0
    %223 = vmatprep.subr.bf16.mxu0 0
    %224 = vmatpush2.bf16.msra.mxu0 0
    %225 = vmatprep.subr.bf16.mxu0 0
    %226 = vmatpush2.bf16.msra.mxu0 0
    %227 = vmatprep.subr.bf16.mxu0 0
    %228 = vmatpush2.bf16.msra.mxu0 0
    %229 = vmatprep.subr.bf16.mxu0 0
    %230 = vmatpush2.bf16.msra.mxu0 0
    %231 = vmatprep.subr.bf16.mxu0 0
    %232 = vmatpush2.bf16.msra.mxu0 0
    %233 = vmatprep.mubr.bf16.mxu0 0
    %234 = vmatmul.mubr.bf16.gmra.mxu0 %v148
    %v235 = vpop.f32.mrf.mxu0
    %v236 = vadd.f32 %v152, %v235
    %v237 = vpop.f32.mrf.mxu0
    %v238 = vpop.f32.mrf.mxu0
    %v239 = vadd.f32 %v152, %v238
    %v240 = vpop.f32.mrf.mxu0
    %241 = vdwg.mxu0
    %v242 = vmax.f32 %v236, 0.0
    %v243 = vmax.f32 %v239, 0.0
    %244 = vmatprep.subr.mxu0 0.0
    %245 = vmatpush1.xpose.msra.mxu0 0.0
    %246 = vmatprep.subr.mxu0 0.0
    %247 = vmatpush1.xpose.msra.mxu0 0.0
    %248 = vmatprep.subr.mxu0 0.0
    %249 = vmatpush1.xpose.msra.mxu0 0.0
    %250 = vmatprep.subr.mxu0 0.0
    %251 = vmatpush1.xpose.msra.mxu0 0.0
    %252 = vmatprep.subr.mxu0 0.0
    %253 = vmatpush1.xpose.msra.mxu0 0.0
    %254 = vmatprep.subr.mxu0 0.0
    %255 = vmatpush1.xpose.msra.mxu0 0.0
    %256 = vmatprep.subr.mxu0 0.0
    %257 = vmatpush1.xpose.msra.mxu0 0.0
    %258 = vmatprep.subr.mxu0 0.0
    %259 = vmatpush1.xpose.msra.mxu0 0.0
    %260 = vmatprep.subr.mxu0 0.0
    %261 = vmatpush1.xpose.msra.mxu0 0.0
    %262 = vmatprep.subr.mxu0 0.0
    %263 = vmatpush1.xpose.msra.mxu0 0.0
    %264 = vmatprep.subr.mxu0 0.0
    %265 = vmatpush1.xpose.msra.mxu0 0.0
    %266 = vmatprep.subr.mxu0 0.0
    %267 = vmatpush1.xpose.msra.mxu0 0.0
    %268 = vmatprep.subr.mxu0 0.0
    %269 = vmatpush1.xpose.msra.mxu0 0.0
    %270 = vmatprep.subr.mxu0 0.0
    %271 = vmatpush1.xpose.msra.mxu0 0.0
    %272 = vmatprep.subr.mxu0 0.0
    %273 = vmatpush1.xpose.msra.mxu0 %v243
    %274 = vmatprep.subr.mxu0 0.0
    %275 = vmatpush1.xpose.msra.mxu0 %v242
    %276 = vmatprep.subr.mxu0 0.0
    %277 = vmatpush2.xpose.msra.mxu0 0.0
    %278 = vmatprep.subr.mxu0 0.0
    %279 = vmatpush2.xpose.msra.mxu0 0.0
    %280 = vmatprep.subr.mxu0 0.0
    %281 = vmatpush2.xpose.msra.mxu0 0.0
    %282 = vmatprep.subr.mxu0 0.0
    %283 = vmatpush2.xpose.msra.mxu0 0.0
    %284 = vmatprep.subr.mxu0 0.0
    %285 = vmatpush2.xpose.msra.mxu0 0.0
    %286 = vmatprep.subr.mxu0 0.0
    %287 = vmatpush2.xpose.msra.mxu0 0.0
    %288 = vmatprep.subr.mxu0 0.0
    %289 = vmatpush2.xpose.msra.mxu0 0.0
    %290 = vmatprep.subr.mxu0 0.0
    %291 = vmatpush2.xpose.msra.mxu0 0.0
    %292 = vmatprep.subr.mxu0 0.0
    %293 = vmatpush2.xpose.msra.mxu0 0.0
    %294 = vmatprep.subr.mxu0 0.0
    %295 = vmatpush2.xpose.msra.mxu0 0.0
    %296 = vmatprep.subr.mxu0 0.0
    %297 = vmatpush2.xpose.msra.mxu0 0.0
    %298 = vmatprep.subr.mxu0 0.0
    %299 = vmatpush2.xpose.msra.mxu0 0.0
    %300 = vmatprep.subr.mxu0 0.0
    %301 = vmatpush2.xpose.msra.mxu0 0.0
    %302 = vmatprep.subr.mxu0 0.0
    %303 = vmatpush2.xpose.msra.mxu0 0.0
    %304 = vmatprep.subr.mxu0 0.0
    %305 = vmatpush2.xpose.msra.mxu0 0.0
    %306 = vmatprep.subr.mxu0 0.0
    %307 = vmatpush2.xpose.msra.mxu0 0.0
    %308 = vmatprep.mubr.f32.mxu0 0.0
    %309 = vmatmul.mubr.f32.gmra.mxu0 %v79
    %v310 = vpop.f32.mrf.mxu0
    %v311 = vadd.f32 0.0, %v310
    %v312 = vpop.f32.mrf.mxu0
    %313 = vdwg.mxu0
    %vm314 = vcmask 122880
    %315 = vst.msk [vmem:[#allocation8] sm:$0x1] %vm314, %v311
    // Predicated region
    $region26: #{tpu_custom_call.1} parent=1 // pred_check
      _
    $region27: #{tpu_custom_call.1} parent=1 // pred_check_branch
      %317 = sbr.rel (0) target = $region29
    $region28: #{tpu_custom_call.1} parent=1 // pred_region
      %s319 = ssub.s32 16, 16
      %320 = vsyncadd [#allocation4], %s319
      %s322 = sshll.u32 [#allocation8], 4
      %s323 = int_to_ptr.vmem [resolvable:$true] %s322
      %325 = dma.vmem_to_hbm [thread:$0]  %s323, 16, %s3, [#allocation4]
    $region29: #{tpu_custom_call.1} parent=1 // pred_fallthru
      _
    // Predicated region
    $region30: #{tpu_custom_call.1} parent=1 // pred_check
      _
    $region31: #{tpu_custom_call.1} parent=1 // pred_check_branch
      %327 = sbr.rel (0) target = $region33
    $region32: #{tpu_custom_call.1} parent=1 // pred_region
      %328 = dma.done [#allocation4], 16
    $region33: #{tpu_custom_call.1} parent=1 // pred_fallthru
      _
    %329 = vsyncpa [#allocation3], 1
    %330 = vsyncpa [#allocation6], 1
    %331 = vsyncpa [#allocation4], 1

</llo_original>
